<compile_context>
chip_gen: v5e
topology: v5e:2x2
jax: 0.10.0
libtpu: 0.0.40
codegen_flags: <defaults>
</compile_context>

<pallas_src>
import functools
import math

import jax
import jax.numpy as jnp
from jax import lax
from jax.experimental import pallas as pl
from jax.experimental.pallas import tpu as pltpu


def _round_up(x: int, m: int) -> int:
    return ((x + m - 1) // m) * m


def _embed_onehot_kernel(ids_ref, emb_ref, out_ref, acc_ref, *,
                         scale, vocab_block, table_resident):
    """One (token block, vocab chunk) grid step.

    ids_ref : (tb, 1)  int32 token ids of this token block (VMEM).
    emb_ref : resident -> (V_pad, D) whole table; streaming -> (tv, D) chunk.
    out_ref : (tb, D)  output block (written at the last vocab chunk).
    acc_ref : (tb, D)  f32 accumulator scratch (lives across the vocab axis).
    """
    k = pl.program_id(1)

    @pl.when(k == 0)
    def _init():
        acc_ref[...] = jnp.zeros_like(acc_ref)

    ids = ids_ref[...]                       # (tb, 1) int32
    tb = ids.shape[0]

    if table_resident:
        # Whole table is resident in VMEM; slice the current vocab chunk.
        off = pl.multiple_of(k * vocab_block, vocab_block)
        rows = emb_ref[pl.ds(off, vocab_block), :]           # (tv, D)
    else:
        rows = emb_ref[...]                                  # (tv, D) streamed

    # One-hot over this vocab chunk; ids outside the chunk simply contribute 0.
    col = lax.broadcasted_iota(jnp.int32, (tb, vocab_block), 1) + k * vocab_block
    one_hot = (col == ids).astype(rows.dtype)                # (tb, tv)

    # Exact lookup: one_hot entries are exactly 0/1; HIGHEST precision keeps
    # f32 table values bit-exact through the MXU passes.
    acc_ref[...] += jnp.dot(one_hot, rows,
                            preferred_element_type=jnp.float32,
                            precision=lax.Precision.HIGHEST)

    @pl.when(k == pl.num_programs(1) - 1)
    def _finish():
        # Dense VPU scale on the full (tb, D) tile, then one unmasked store.
        out_ref[...] = (acc_ref[...] * scale).astype(out_ref.dtype)


def input_embedding(token_ids, emb_table, *, token_block=512, vocab_chunk=1024,
                    vmem_budget_bytes=None):
    """token_ids: (...,) int; emb_table: (V, D) -> (..., D) scaled embeddings."""
    orig_shape = tuple(token_ids.shape)
    vocab_size, d_model = emb_table.shape
    n = math.prod(orig_shape)
    scale = float(math.sqrt(d_model))
    itemsize = jnp.dtype(emb_table.dtype).itemsize

    # ---- per-generation VMEM budget (64 MiB/TC on v7x, 128 MiB on v5e/v6e) --
    try:
        vmem_cap = int(getattr(pltpu.get_tpu_info(), "vmem_capacity_bytes",
                               64 << 20))
    except Exception:
        vmem_cap = 64 << 20
    if vmem_budget_bytes is None:
        vmem_budget_bytes = (vmem_cap * 3) // 4

    # ---- token blocking ------------------------------------------------------
    if n >= token_block:
        tb = _round_up(token_block, 8)
    else:
        tb = max(8, (n // 8) * 8)            # avoid block > array dim when n>=8

    # ---- vocab chunking ------------------------------------------------------
    tv = max(8, min(_round_up(vocab_chunk, 8), _round_up(vocab_size, 8)))

    def working_bytes(tb_, tv_):
        return (2 * tb_ * d_model * itemsize     # double-buffered output block
                + tb_ * d_model * 4              # f32 accumulator scratch
                + tb_ * tv_ * (4 + itemsize)     # iota + one-hot intermediates
                + 2 * tb_ * 4)                   # (tb,1) id block

    while tb > 8 and working_bytes(tb, tv) > vmem_budget_bytes // 2:
        tb = max(8, ((tb // 2) // 8) * 8)

    table_resident = (working_bytes(tb, tv)
                      + _round_up(vocab_size, tv) * d_model * itemsize
                      <= vmem_budget_bytes)
    if not table_resident:
        # Streaming fallback: shrink the streamed chunk until it fits.
        # TODO(synk): per-row pltpu.make_async_copy DMA gather (table in
        # pl.ANY/HBM, 8-16 row copies in flight) to avoid streaming the whole
        # table per token block for huge vocabularies.
        while tv > 8 and (working_bytes(tb, tv) + 2 * tv * d_model * itemsize
                          > vmem_budget_bytes):
            tv = max(8, ((tv // 2) // 8) * 8)

    # ---- pad table rows with zeros (keeps ds slices in-bounds; padded rows
    # never match a valid id, so they contribute exactly 0) -------------------
    v_pad = _round_up(vocab_size, tv)
    emb = emb_table
    if v_pad != vocab_size:
        emb = jnp.pad(emb, ((0, v_pad - vocab_size), (0, 0)))
    n_vchunks = v_pad // tv

    # ---- flatten / pad ids (padding uses valid id 0; padded output rows are
    # masked off by Pallas since out_shape is exactly (n, D)) -----------------
    n_blocks = (n + tb - 1) // tb
    n_pad = n_blocks * tb
    flat_ids = jnp.reshape(token_ids, (n, 1)).astype(jnp.int32)
    if n_pad != n:
        flat_ids = jnp.pad(flat_ids, ((0, n_pad - n), (0, 0)))

    kernel = functools.partial(_embed_onehot_kernel, scale=scale,
                               vocab_block=tv, table_resident=table_resident)

    def launch(table_spec, table_vmem_bytes):
        vmem_needed = working_bytes(tb, tv) + table_vmem_bytes
        vmem_limit = int(min(vmem_cap, max(vmem_needed + (8 << 20), 32 << 20)))
        return pl.pallas_call(
            kernel,
            out_shape=jax.ShapeDtypeStruct((n, d_model), emb_table.dtype),
            grid_spec=pltpu.PrefetchScalarGridSpec(
                num_scalar_prefetch=0,
                grid=(n_blocks, n_vchunks),          # vocab (reduction) axis last
                in_specs=[
                    pl.BlockSpec((tb, 1), lambda i, k: (i, 0)),   # token ids
                    table_spec,                                   # embedding table
                ],
                out_specs=pl.BlockSpec((tb, d_model), lambda i, k: (i, 0)),
                scratch_shapes=[pltpu.VMEM((tb, d_model), jnp.float32)],
            ),
            compiler_params=pltpu.CompilerParams(
                dimension_semantics=("parallel", "arbitrary"),
                vmem_limit_bytes=vmem_limit),
        )(flat_ids, emb)

    if table_resident:
        tbl_bytes = v_pad * d_model * itemsize
        try:
            # Constant block index -> table DMA'd once; single-buffered to
            # halve its VMEM footprint.
            out = launch(pl.BlockSpec((v_pad, d_model), lambda i, k: (0, 0),
                                      pipeline_mode=pl.Buffered(1)),
                         tbl_bytes)
        except Exception:
            # Fallback if this jax build rejects single-buffering; identical
            # semantics, just default (double) buffering of the table.
            out = launch(pl.BlockSpec((v_pad, d_model), lambda i, k: (0, 0)),
                         2 * tbl_bytes)
    else:
        out = launch(pl.BlockSpec((tv, d_model), lambda i, k: (k, 0)),
                     2 * tv * d_model * itemsize)

    return out.reshape(*orig_shape, d_model)


if __name__ == "__main__":
    key = jax.random.PRNGKey(0)

    # --- Case 1: small shapes implied by the module (resident table) --------
    d_model, vocab_size, batch, seq = 128, 64, 2, 8
    k_emb, k_ids, key = jax.random.split(key, 3)
    emb_table = jax.random.normal(k_emb, (vocab_size, d_model), dtype=jnp.float32)
    token_ids = jax.random.randint(k_ids, (batch, seq), 0, vocab_size,
                                   dtype=jnp.int32)
    out = jax.block_until_ready(input_embedding(token_ids, emb_table))
    ref = emb_table[token_ids] * math.sqrt(d_model)
    assert out.shape == (batch, seq, d_model) and out.dtype == jnp.float32
    assert jnp.allclose(out, ref, atol=1e-6, rtol=1e-6)

    # --- Case 2: ragged token count + vocab not a multiple of 8 -------------
    d2, v2, b2, s2 = 256, 517, 3, 17
    k_emb2, k_ids2, key = jax.random.split(key, 3)
    emb2 = jax.random.normal(k_emb2, (v2, d2), dtype=jnp.float32)
    ids2 = jax.random.randint(k_ids2, (b2, s2), 0, v2, dtype=jnp.int32)
    out2 = jax.block_until_ready(input_embedding(ids2, emb2))
    ref2 = emb2[ids2] * math.sqrt(d2)
    assert out2.shape == (b2, s2, d2)
    assert jnp.allclose(out2, ref2, atol=1e-6, rtol=1e-6)

    # --- Case 2b: resident table walked in multiple vocab chunks ------------
    out2b = jax.block_until_ready(input_embedding(ids2, emb2, vocab_chunk=128))
    assert jnp.allclose(out2b, ref2, atol=1e-6, rtol=1e-6)

    # --- Case 3: force the streaming (non-resident) large-vocab path --------
    d3, v3 = 128, 4096
    k_emb3, k_ids3, key = jax.random.split(key, 3)
    emb3 = jax.random.normal(k_emb3, (v3, d3), dtype=jnp.float32)
    ids3 = jax.random.randint(k_ids3, (2, 8), 0, v3, dtype=jnp.int32)
    out3 = jax.block_until_ready(
        input_embedding(ids3, emb3, vmem_budget_bytes=1 << 20))
    ref3 = emb3[ids3] * math.sqrt(d3)
    assert jnp.allclose(out3, ref3, atol=1e-6, rtol=1e-6)

    # --- Case 4: bf16 table (scale applied in f32, rounded once at store) ---
    emb_bf16 = emb_table.astype(jnp.bfloat16)
    out4 = jax.block_until_ready(input_embedding(token_ids, emb_bf16))
    ref4 = (emb_bf16[token_ids].astype(jnp.float32)
            * math.sqrt(d_model)).astype(jnp.bfloat16)
    assert out4.dtype == jnp.bfloat16
    assert jnp.allclose(out4.astype(jnp.float32), ref4.astype(jnp.float32),
                        atol=1e-6, rtol=1e-6)

    print("KERNEL_OK")
</pallas_src>

<mosaic_0001>
module attributes {stable_mosaic.version = 11 : i64} {
  func.func @_embed_onehot_kernel(%arg0: i32, %arg1: i32, %arg2: memref<16x1xi32, #tpu.memory_space<vmem>>, %arg3: memref<64x128xf32, #tpu.memory_space<vmem>>, %arg4: memref<16x128xf32, #tpu.memory_space<vmem>>, %arg5: memref<16x128xf32, #tpu.memory_space<vmem>>) attributes {dimension_semantics = [#tpu.dimension_semantics<parallel>, #tpu.dimension_semantics<arbitrary>], iteration_bounds = array<i64: 1, 1>, scalar_prefetch = 0 : i64, scratch_operands = 1 : i64, tpu.core_type = #tpu.core_type<tc>, window_params = [{transform_indices = @transform_0, window_bounds = array<i64: 16, 1>}, {pipeline_mode = #tpu.pipeline_mode<synchronous>, transform_indices = @transform_1, window_bounds = array<i64: 64, 128>}, {transform_indices = @transform_2, window_bounds = array<i64: 16, 128>}]} {
    %c0_i32 = arith.constant 0 : i32
    %0 = arith.cmpi eq, %arg1, %c0_i32 : i32
    %1 = arith.extui %0 : i1 to i32
    %c0_i32_0 = arith.constant 0 : i32
    %2 = arith.cmpi ne, %1, %c0_i32_0 : i32
    scf.if %2 {
      %cst_10 = arith.constant 0.000000e+00 : f32
      %23 = vector.broadcast %cst_10 : f32 to vector<16x128xf32>
      %c0_11 = arith.constant 0 : index
      %c0_12 = arith.constant 0 : index
      %24 = vector.load %arg5[%c0_11, %c0_12] : memref<16x128xf32, #tpu.memory_space<vmem>>, vector<16x128xf32>
      tpu.vector_store %arg5[%c0_11, %c0_12], %23 {strides = array<i32>} : memref<16x128xf32, #tpu.memory_space<vmem>>, vector<16x128xf32>,
    } else {
    }
    %c0 = arith.constant 0 : index
    %c0_1 = arith.constant 0 : index
    %3 = vector.load %arg2[%c0, %c0_1] : memref<16x1xi32, #tpu.memory_space<vmem>>, vector<16x1xi32>
    %c64_i32 = arith.constant 64 : i32
    %4 = arith.muli %arg1, %c64_i32 : i32
    %5 = tpu.assume_multiple %4, 64 : i32
    %6 = arith.index_cast %5 : i32 to index
    %c0_2 = arith.constant 0 : index
    %7 = vector.load %arg3[%6, %c0_2] : memref<64x128xf32, #tpu.memory_space<vmem>>, vector<64x128xf32>
    %8 = tpu.iota {dimensions = array<i32: 1>} : vector<16x64xi32>
    %c64_i32_3 = arith.constant 64 : i32
    %9 = arith.muli %arg1, %c64_i32_3 : i32
    %10 = vector.broadcast %9 : i32 to vector<16x64xi32>
    %11 = arith.addi %8, %10 : vector<16x64xi32>
    %12 = vector.broadcast %3 : vector<16x1xi32> to vector<16x64xi32>
    %13 = arith.cmpi eq, %11, %12 : vector<16x64xi32>
    %14 = arith.extui %13 : vector<16x64xi1> to vector<16x64xi32>
    %15 = arith.sitofp %14 : vector<16x64xi32> to vector<16x64xf32>
    %c0_4 = arith.constant 0 : index
    %c0_5 = arith.constant 0 : index
    %16 = vector.load %arg5[%c0_4, %c0_5] : memref<16x128xf32, #tpu.memory_space<vmem>>, vector<16x128xf32>
    %cst = arith.constant dense<0.000000e+00> : vector<16x128xf32>
    %17 = tpu.matmul %15, %7, %cst {dimension_numbers = #tpu.dot_dimension_numbers<[1], [0], [0], [1], [0, 0, 1, 1], [], []>, precision = #tpu.contract_precision<fp32>} : vector<16x64xf32>, vector<64x128xf32>, vector<16x128xf32> -> vector<16x128xf32>
    %18 = arith.addf %16, %17 : vector<16x128xf32>
    %c0_6 = arith.constant 0 : index
    %c0_7 = arith.constant 0 : index
    %19 = vector.load %arg5[%c0_6, %c0_7] : memref<16x128xf32, #tpu.memory_space<vmem>>, vector<16x128xf32>
    tpu.vector_store %arg5[%c0_6, %c0_7], %18 {strides = array<i32>} : memref<16x128xf32, #tpu.memory_space<vmem>>, vector<16x128xf32>,
    %c0_i32_8 = arith.constant 0 : i32
    %20 = arith.cmpi eq, %arg1, %c0_i32_8 : i32
    %21 = arith.extui %20 : i1 to i32
    %c0_i32_9 = arith.constant 0 : i32
    %22 = arith.cmpi ne, %21, %c0_i32_9 : i32
    scf.if %22 {
      %c0_10 = arith.constant 0 : index
      %c0_11 = arith.constant 0 : index
      %23 = vector.load %arg5[%c0_10, %c0_11] : memref<16x128xf32, #tpu.memory_space<vmem>>, vector<16x128xf32>
      %cst_12 = arith.constant 11.3137083 : f32
      %24 = vector.broadcast %cst_12 : f32 to vector<16x128xf32>
      %25 = arith.mulf %23, %24 : vector<16x128xf32>
      %c0_13 = arith.constant 0 : index
      %c0_14 = arith.constant 0 : index
      %26 = vector.load %arg4[%c0_13, %c0_14] : memref<16x128xf32, #tpu.memory_space<vmem>>, vector<16x128xf32>
      tpu.vector_store %arg4[%c0_13, %c0_14], %25 {strides = array<i32>} : memref<16x128xf32, #tpu.memory_space<vmem>>, vector<16x128xf32>,
    } else {
    }
    return
  }
  func.func @transform_0(%arg0: i32, %arg1: i32) -> (i32, i32) {
    %c0_i32 = arith.constant 0 : i32
    %c0_i32_0 = arith.constant 0 : i32
    return %arg0, %c0_i32 : i32, i32
  }
  func.func @transform_1(%arg0: i32, %arg1: i32) -> (i32, i32) {
    %c0_i32 = arith.constant 0 : i32
    %c0_i32_0 = arith.constant 0 : i32
    %c0_i32_1 = arith.constant 0 : i32
    return %c0_i32, %c0_i32_0 : i32, i32
  }
  func.func @transform_2(%arg0: i32, %arg1: i32) -> (i32, i32) {
    %c0_i32 = arith.constant 0 : i32
    %c0_i32_0 = arith.constant 0 : i32
    return %arg0, %c0_i32 : i32, i32
  }
}

module attributes {stable_mosaic.version = 11 : i64} {
  func.func @_embed_onehot_kernel(%arg0: i32, %arg1: i32, %arg2: memref<16x1xi32, #tpu.memory_space<vmem>>, %arg3: memref<64x128xf32, #tpu.memory_space<vmem>>, %arg4: memref<16x128xf32, #tpu.memory_space<vmem>>, %arg5: memref<16x128xf32, #tpu.memory_space<vmem>>) attributes {dimension_semantics = [#tpu.dimension_semantics<parallel>, #tpu.dimension_semantics<arbitrary>], iteration_bounds = array<i64: 1, 1>, scalar_prefetch = 0 : i64, scratch_operands = 1 : i64, tpu.core_type = #tpu.core_type<tc>, window_params = [{transform_indices = @transform_0, window_bounds = array<i64: 16, 1>}, {pipeline_mode = #tpu.pipeline_mode<synchronous>, transform_indices = @transform_1, window_bounds = array<i64: 64, 128>}, {transform_indices = @transform_2, window_bounds = array<i64: 16, 128>}]} {
    %c0_i32 = arith.constant 0 : i32
    %0 = arith.cmpi eq, %arg1, %c0_i32 : i32
    %1 = arith.extui %0 : i1 to i32
    %c0_i32_0 = arith.constant 0 : i32
    %2 = arith.cmpi ne, %1, %c0_i32_0 : i32
    scf.if %2 {
      %cst_10 = arith.constant 0.000000e+00 : f32
      %23 = vector.broadcast %cst_10 : f32 to vector<16x128xf32>
      %c0_11 = arith.constant 0 : index
      %c0_12 = arith.constant 0 : index
      %24 = vector.load %arg5[%c0_11, %c0_12] : memref<16x128xf32, #tpu.memory_space<vmem>>, vector<16x128xf32>
      tpu.vector_store %arg5[%c0_11, %c0_12], %23 {strides = array<i32>} : memref<16x128xf32, #tpu.memory_space<vmem>>, vector<16x128xf32>,
    } else {
    }
    %c0 = arith.constant 0 : index
    %c0_1 = arith.constant 0 : index
    %3 = vector.load %arg2[%c0, %c0_1] : memref<16x1xi32, #tpu.memory_space<vmem>>, vector<16x1xi32>
    %c64_i32 = arith.constant 64 : i32
    %4 = arith.muli %arg1, %c64_i32 : i32
    %5 = tpu.assume_multiple %4, 64 : i32
    %6 = arith.index_cast %5 : i32 to index
    %c0_2 = arith.constant 0 : index
    %7 = vector.load %arg3[%6, %c0_2] : memref<64x128xf32, #tpu.memory_space<vmem>>, vector<64x128xf32>
    %8 = tpu.iota {dimensions = array<i32: 1>} : vector<16x64xi32>
    %c64_i32_3 = arith.constant 64 : i32
    %9 = arith.muli %arg1, %c64_i32_3 : i32
    %10 = vector.broadcast %9 : i32 to vector<16x64xi32>
    %11 = arith.addi %8, %10 : vector<16x64xi32>
    %12 = vector.broadcast %3 : vector<16x1xi32> to vector<16x64xi32>
    %13 = arith.cmpi eq, %11, %12 : vector<16x64xi32>
    %14 = arith.extui %13 : vector<16x64xi1> to vector<16x64xi32>
    %15 = arith.sitofp %14 : vector<16x64xi32> to vector<16x64xf32>
    %c0_4 = arith.constant 0 : index
    %c0_5 = arith.constant 0 : index
    %16 = vector.load %arg5[%c0_4, %c0_5] : memref<16x128xf32, #tpu.memory_space<vmem>>, vector<16x128xf32>
    %cst = arith.constant dense<0.000000e+00> : vector<16x128xf32>
    %17 = tpu.matmul %15, %7, %cst {dimension_numbers = #tpu.dot_dimension_numbers<[1], [0], [0], [1], [0, 0, 1, 1], [], []>, precision = #tpu.contract_precision<fp32>} : vector<16x64xf32>, vector<64x128xf32>, vector<16x128xf32> -> vector<16x128xf32>
    %18 = arith.addf %16, %17 : vector<16x128xf32>
    %c0_6 = arith.constant 0 : index
    %c0_7 = arith.constant 0 : index
    %19 = vector.load %arg5[%c0_6, %c0_7] : memref<16x128xf32, #tpu.memory_space<vmem>>, vector<16x128xf32>
    tpu.vector_store %arg5[%c0_6, %c0_7], %18 {strides = array<i32>} : memref<16x128xf32, #tpu.memory_space<vmem>>, vector<16x128xf32>,
    %c0_i32_8 = arith.constant 0 : i32
    %20 = arith.cmpi eq, %arg1, %c0_i32_8 : i32
    %21 = arith.extui %20 : i1 to i32
    %c0_i32_9 = arith.constant 0 : i32
    %22 = arith.cmpi ne, %21, %c0_i32_9 : i32
    scf.if %22 {
      %c0_10 = arith.constant 0 : index
      %c0_11 = arith.constant 0 : index
      %23 = vector.load %arg5[%c0_10, %c0_11] : memref<16x128xf32, #tpu.memory_space<vmem>>, vector<16x128xf32>
      %cst_12 = arith.constant 11.3137083 : f32
      %24 = vector.broadcast %cst_12 : f32 to vector<16x128xf32>
      %25 = arith.mulf %23, %24 : vector<16x128xf32>
      %c0_13 = arith.constant 0 : index
      %c0_14 = arith.constant 0 : index
      %26 = vector.load %arg4[%c0_13, %c0_14] : memref<16x128xf32, #tpu.memory_space<vmem>>, vector<16x128xf32>
      tpu.vector_store %arg4[%c0_13, %c0_14], %25 {strides = array<i32>} : memref<16x128xf32, #tpu.memory_space<vmem>>, vector<16x128xf32>,
    } else {
    }
    return
  }
  func.func @transform_0(%arg0: i32, %arg1: i32) -> (i32, i32) {
    %c0_i32 = arith.constant 0 : i32
    %c0_i32_0 = arith.constant 0 : i32
    return %arg0, %c0_i32 : i32, i32
  }
  func.func @transform_1(%arg0: i32, %arg1: i32) -> (i32, i32) {
    %c0_i32 = arith.constant 0 : i32
    %c0_i32_0 = arith.constant 0 : i32
    %c0_i32_1 = arith.constant 0 : i32
    return %c0_i32, %c0_i32_0 : i32, i32
  }
  func.func @transform_2(%arg0: i32, %arg1: i32) -> (i32, i32) {
    %c0_i32 = arith.constant 0 : i32
    %c0_i32_0 = arith.constant 0 : i32
    return %arg0, %c0_i32 : i32, i32
  }
}

</mosaic_0001>

<llo_original>
// kernel: tpu_custom_call.1
$region0: #{tpu_custom_call.1}
  #allocation0 [shape = 'u32[]', space=smem, size = 0x4, offset = 0x4, fixed_abs, tag = 'smem constant byte address 0x4 - core index']
  #allocation1 [shape = 'u32[72,128]{1,0:T(1,128)}', space=vmem, size = 0x9000, scoped, tag = 'internal scratch']
  #allocation2 [shape = 'f32[16,128]{1,0:T(8,128)}', space=vmem, size = 0x2000, scoped, tag = 'scratch operand']
  %s0 = inlined_call_operand.vmem [shape: s32[16,1], index: 0, kind: input, shape index: {}]
  %s1 = inlined_call_operand.hbm [shape: f32[64,128], index: 1, kind: input, shape index: {}]
  %s2 = inlined_call_operand.hbm [shape: f32[16,128], index: 2, kind: output, shape index: {}]
  %s3 = sld [smem:[#allocation0]]
  $region30: #{tpu_custom_call.1} parent=0
    _
  %s5 = ssub.s32 1, %s3
  %s6 = scalar_select 0, %s5, %s3
  $region1: #{tpu_custom_call.1} parent=0
    #allocation3 [shape = 'u8[32768]{0}', space=vmem, size = 0x8000, scoped, tag = 'input window, operand 1, single buffered']
    #allocation4 [shape = 's32[1]{0}', space=sflag, size = 0x4, scoped, tag = 'scoped memory for tpu_custom_call.1']
    #allocation5 [shape = 's32[1]{0}', space=sflag, size = 0x4, scoped, tag = 'scoped memory for tpu_custom_call.1']
    #allocation6 [shape = 'u8[8192]{0}', space=vmem, size = 0x2000, scoped, tag = 'output window, operand 0, single buffered']
    %7 = vsyncpa [#allocation4], 0
    %8 = vsyncpa [#allocation5], 0
    // Predicated region
    $region2: #{tpu_custom_call.1} parent=1 // pred_check
      _
    $region3: #{tpu_custom_call.1} parent=1 // pred_check_branch
      %10 = sbr.rel (0) target = $region5
    $region4: #{tpu_custom_call.1} parent=1 // pred_region
      _
    $region5: #{tpu_custom_call.1} parent=1 // pred_fallthru
      _
    // Predicated region
    $region6: #{tpu_custom_call.1} parent=1 // pred_check
      _
    $region7: #{tpu_custom_call.1} parent=1 // pred_check_branch
      %12 = sbr.rel (0) target = $region9
    $region8: #{tpu_custom_call.1} parent=1 // pred_region
      %14 = vsyncadd [#allocation4], 0
      %s15 = sshll.u32 %s1, 4
      %s16 = int_to_ptr.hbm [resolvable:$true] %s15
      %s17 = sshll.u32 [#allocation3], 4
      %s18 = int_to_ptr.vmem [resolvable:$true] %s17
      %23 = dma.hbm_to_vmem [thread:$0]  %s16, 1024, %s18, [#allocation4], 128, 128, 8
    $region9: #{tpu_custom_call.1} parent=1 // pred_fallthru
      _
    // Predicated region
    $region10: #{tpu_custom_call.1} parent=1 // pred_check
      _
    $region11: #{tpu_custom_call.1} parent=1 // pred_check_branch
      %25 = sbr.rel (0) target = $region13
    $region12: #{tpu_custom_call.1} parent=1 // pred_region
      %27 = dma.done [#allocation4], 1024
    $region13: #{tpu_custom_call.1} parent=1 // pred_fallthru
      _
    %p28 = scmp.eq.s32.totalorder 0, 0
    // Predicated region
    $region14: #{tpu_custom_call.1} parent=1 // pred_check
      %p29 = pneg %p28
    $region15: #{tpu_custom_call.1} parent=1 // pred_check_branch
      %31 = sbr.rel (%p29) target = $region17
    $region16: #{tpu_custom_call.1} parent=1 // pred_region
      %32 = vst [vmem:[#allocation2] sm:$0xff] 0.0
      %33 = vst [vmem:[#allocation2 + $0x8] sm:$0xff] 0.0
    $region17: #{tpu_custom_call.1} parent=1 // pred_fallthru
      _
    %v34 = vld [vmem:[%s0] sm:$0xff]
    %v35 = vld [vmem:[%s0 + $0x8] sm:$0xff]
    %s36 = smul.u32 0, 64
    %s37 = scalar_lea.vmem [#allocation3], %s36
    %v38 = vld [vmem:[%s37] sm:$0xff]
    %v39 = vld [vmem:[%s37 + $0x8] sm:$0xff]
    %v40 = vld [vmem:[%s37 + $0x10] sm:$0xff]
    %v41 = vld [vmem:[%s37 + $0x18] sm:$0xff]
    %v42 = vld [vmem:[%s37 + $0x20] sm:$0xff]
    %v43 = vld [vmem:[%s37 + $0x28] sm:$0xff]
    %v44 = vld [vmem:[%s37 + $0x30] sm:$0xff]
    %v45 = vld [vmem:[%s37 + $0x38] sm:$0xff]
    %v46 = vlaneseq
    %v47 = vand.u32 %v46, 127
    %v48 = vstv %s36
    %v49 = vadd.s32 %v47, %v48
    %50 = vset.pattern.permute.xlu0 0
    %51 = vperm.xlu0 %50, %v34
    %v52 = vpop.permute.xlu0 %51
    %53 = vset.pattern.permute.xlu0 0
    %54 = vperm.xlu0 %53, %v35
    %v55 = vpop.permute.xlu0 %54
    %vm56 = vcmp.eq.s32.totalorder %v49, %v52
    %vm57 = vcmp.eq.s32.totalorder %v49, %v55
    %v58 = vsel %vm56, 1, 0
    %v59 = vsel %vm57, 1, 0
    %v60 = vcvt.s32.f32 %v58
    %v61 = vcvt.s32.f32 %v59
    %v62 = vld [vmem:[#allocation2] sm:$0xff]
    %v63 = vld [vmem:[#allocation2 + $0x8] sm:$0xff]
    %vm64 = vcmask 523264
    %v66 = vsel %vm64, %v60, 0
    %v69 = vsel %vm64, %v61, 0
    %71 = vmatpush.msra.mxu0 0.0
    %72 = vmatpush.msra.mxu0 0.0
    %73 = vmatpush.msra.mxu0 0.0
    %74 = vmatpush.msra.mxu0 0.0
    %75 = vmatpush.msra.mxu0 0.0
    %76 = vmatpush.msra.mxu0 0.0
    %77 = vmatpush.msra.mxu0 0.0
    %78 = vmatpush.msra.mxu0 0.0
    %v79 = vand.u32 %v45, 4294901760
    %80 = vmatpush.msra.mxu0 %v79
    %v81 = vand.u32 %v44, 4294901760
    %82 = vmatpush.msra.mxu0 %v81
    %v83 = vand.u32 %v43, 4294901760
    %84 = vmatpush.msra.mxu0 %v83
    %v85 = vand.u32 %v42, 4294901760
    %86 = vmatpush.msra.mxu0 %v85
    %v87 = vand.u32 %v41, 4294901760
    %88 = vmatpush.msra.mxu0 %v87
    %v89 = vand.u32 %v40, 4294901760
    %90 = vmatpush.msra.mxu0 %v89
    %v91 = vand.u32 %v39, 4294901760
    %92 = vmatpush.msra.mxu0 %v91
    %v93 = vand.u32 %v38, 4294901760
    %94 = vmatpush.msra.mxu0 %v93
    %v95 = vand.u32 %v66, 4294901760
    %v96 = vsub.f32 %v66, %v95
    %v97 = vand.u32 %v96, 4294901760
    %v98 = vsub.f32 %v96, %v97
    %v99 = vand.u32 %v98, 4294901760
    %100 = vmatmul.f32.gmra.mxu0 %v99
    %v101 = vpop.f32.mrf.mxu0
    %v102 = vadd.f32 0.0, %v101
    %v103 = vand.u32 %v69, 4294901760
    %v104 = vsub.f32 %v69, %v103
    %v105 = vand.u32 %v104, 4294901760
    %v106 = vsub.f32 %v104, %v105
    %v107 = vand.u32 %v106, 4294901760
    %108 = vmatmul.f32.gmra.mxu0 %v107
    %v109 = vpop.f32.mrf.mxu0
    %v110 = vadd.f32 0.0, %v109
    %111 = vdwg.mxu0
    %112 = vmatpush.msra.mxu0 0.0
    %113 = vmatpush.msra.mxu0 0.0
    %114 = vmatpush.msra.mxu0 0.0
    %115 = vmatpush.msra.mxu0 0.0
    %116 = vmatpush.msra.mxu0 0.0
    %117 = vmatpush.msra.mxu0 0.0
    %118 = vmatpush.msra.mxu0 0.0
    %119 = vmatpush.msra.mxu0 0.0
    %v120 = vand.u32 %v45, 4294901760
    %v121 = vsub.f32 %v45, %v120
    %v122 = vand.u32 %v121, 4294901760
    %v123 = vsub.f32 %v121, %v122
    %v124 = vand.u32 %v123, 4294901760
    %125 = vmatpush.msra.mxu0 %v124
    %v126 = vand.u32 %v44, 4294901760
    %v127 = vsub.f32 %v44, %v126
    %v128 = vand.u32 %v127, 4294901760
    %v129 = vsub.f32 %v127, %v128
    %v130 = vand.u32 %v129, 4294901760
    %131 = vmatpush.msra.mxu0 %v130
    %v132 = vand.u32 %v43, 4294901760
    %v133 = vsub.f32 %v43, %v132
    %v134 = vand.u32 %v133, 4294901760
    %v135 = vsub.f32 %v133, %v134
    %v136 = vand.u32 %v135, 4294901760
    %137 = vmatpush.msra.mxu0 %v136
    %v138 = vand.u32 %v42, 4294901760
    %v139 = vsub.f32 %v42, %v138
    %v140 = vand.u32 %v139, 4294901760
    %v141 = vsub.f32 %v139, %v140
    %v142 = vand.u32 %v141, 4294901760
    %143 = vmatpush.msra.mxu0 %v142
    %v144 = vand.u32 %v41, 4294901760
    %v145 = vsub.f32 %v41, %v144
    %v146 = vand.u32 %v145, 4294901760
    %v147 = vsub.f32 %v145, %v146
    %v148 = vand.u32 %v147, 4294901760
    %149 = vmatpush.msra.mxu0 %v148
    %v150 = vand.u32 %v40, 4294901760
    %v151 = vsub.f32 %v40, %v150
    %v152 = vand.u32 %v151, 4294901760
    %v153 = vsub.f32 %v151, %v152
    %v154 = vand.u32 %v153, 4294901760
    %155 = vmatpush.msra.mxu0 %v154
    %v156 = vand.u32 %v39, 4294901760
    %v157 = vsub.f32 %v39, %v156
    %v158 = vand.u32 %v157, 4294901760
    %v159 = vsub.f32 %v157, %v158
    %v160 = vand.u32 %v159, 4294901760
    %161 = vmatpush.msra.mxu0 %v160
    %v162 = vand.u32 %v38, 4294901760
    %v163 = vsub.f32 %v38, %v162
    %v164 = vand.u32 %v163, 4294901760
    %v165 = vsub.f32 %v163, %v164
    %v166 = vand.u32 %v165, 4294901760
    %167 = vmatpush.msra.mxu0 %v166
    %v168 = vand.u32 %v66, 4294901760
    %169 = vmatmul.f32.gmra.mxu0 %v168
    %v170 = vpop.f32.mrf.mxu0
    %v171 = vadd.f32 %v102, %v170
    %v172 = vand.u32 %v69, 4294901760
    %173 = vmatmul.f32.gmra.mxu0 %v172
    %v174 = vpop.f32.mrf.mxu0
    %v175 = vadd.f32 %v110, %v174
    %176 = vdwg.mxu0
    %177 = vmatpush.msra.mxu0 0.0
    %178 = vmatpush.msra.mxu0 0.0
    %179 = vmatpush.msra.mxu0 0.0
    %180 = vmatpush.msra.mxu0 0.0
    %181 = vmatpush.msra.mxu0 0.0
    %182 = vmatpush.msra.mxu0 0.0
    %183 = vmatpush.msra.mxu0 0.0
    %184 = vmatpush.msra.mxu0 0.0
    %v185 = vand.u32 %v45, 4294901760
    %v186 = vsub.f32 %v45, %v185
    %187 = vmatpush.msra.mxu0 %v186
    %v188 = vand.u32 %v44, 4294901760
    %v189 = vsub.f32 %v44, %v188
    %190 = vmatpush.msra.mxu0 %v189
    %v191 = vand.u32 %v43, 4294901760
    %v192 = vsub.f32 %v43, %v191
    %193 = vmatpush.msra.mxu0 %v192
    %v194 = vand.u32 %v42, 4294901760
    %v195 = vsub.f32 %v42, %v194
    %196 = vmatpush.msra.mxu0 %v195
    %v197 = vand.u32 %v41, 4294901760
    %v198 = vsub.f32 %v41, %v197
    %199 = vmatpush.msra.mxu0 %v198
    %v200 = vand.u32 %v40, 4294901760
    %v201 = vsub.f32 %v40, %v200
    %202 = vmatpush.msra.mxu0 %v201
    %v203 = vand.u32 %v39, 4294901760
    %v204 = vsub.f32 %v39, %v203
    %205 = vmatpush.msra.mxu0 %v204
    %v206 = vand.u32 %v38, 4294901760
    %v207 = vsub.f32 %v38, %v206
    %208 = vmatpush.msra.mxu0 %v207
    %v209 = vand.u32 %v66, 4294901760
    %v210 = vsub.f32 %v66, %v209
    %211 = vmatmul.f32.gmra.mxu0 %v210
    %v212 = vpop.f32.mrf.mxu0
    %v213 = vadd.f32 %v171, %v212
    %v214 = vand.u32 %v69, 4294901760
    %v215 = vsub.f32 %v69, %v214
    %216 = vmatmul.f32.gmra.mxu0 %v215
    %v217 = vpop.f32.mrf.mxu0
    %v218 = vadd.f32 %v175, %v217
    %219 = vdwg.mxu0
    %220 = vmatpush.msra.mxu0 0.0
    %221 = vmatpush.msra.mxu0 0.0
    %222 = vmatpush.msra.mxu0 0.0
    %223 = vmatpush.msra.mxu0 0.0
    %224 = vmatpush.msra.mxu0 0.0
    %225 = vmatpush.msra.mxu0 0.0
    %226 = vmatpush.msra.mxu0 0.0
    %227 = vmatpush.msra.mxu0 0.0
    %v228 = vand.u32 %v45, 4294901760
    %229 = vmatpush.msra.mxu0 %v228
    %v230 = vand.u32 %v44, 4294901760
    %231 = vmatpush.msra.mxu0 %v230
    %v232 = vand.u32 %v43, 4294901760
    %233 = vmatpush.msra.mxu0 %v232
    %v234 = vand.u32 %v42, 4294901760
    %235 = vmatpush.msra.mxu0 %v234
    %v236 = vand.u32 %v41, 4294901760
    %237 = vmatpush.msra.mxu0 %v236
    %v238 = vand.u32 %v40, 4294901760
    %239 = vmatpush.msra.mxu0 %v238
    %v240 = vand.u32 %v39, 4294901760
    %241 = vmatpush.msra.mxu0 %v240
    %v242 = vand.u32 %v38, 4294901760
    %243 = vmatpush.msra.mxu0 %v242
    %v244 = vand.u32 %v66, 4294901760
    %v245 = vsub.f32 %v66, %v244
    %v246 = vand.u32 %v245, 4294901760
    %247 = vmatmul.f32.gmra.mxu0 %v246
    %v248 = vpop.f32.mrf.mxu0
    %v249 = vadd.f32 %v213, %v248
    %v250 = vand.u32 %v69, 4294901760
    %v251 = vsub.f32 %v69, %v250
    %v252 = vand.u32 %v251, 4294901760
    %253 = vmatmul.f32.gmra.mxu0 %v252
    %v254 = vpop.f32.mrf.mxu0
    %v255 = vadd.f32 %v218, %v254
    %256 = vdwg.mxu0
    %257 = vmatpush.msra.mxu0 0.0
    %258 = vmatpush.msra.mxu0 0.0
    %259 = vmatpush.msra.mxu0 0.0
    %260 = vmatpush.msra.mxu0 0.0
    %261 = vmatpush.msra.mxu0 0.0
    %262 = vmatpush.msra.mxu0 0.0
    %263 = vmatpush.msra.mxu0 0.0
    %264 = vmatpush.msra.mxu0 0.0
    %v265 = vand.u32 %v45, 4294901760
    %v266 = vsub.f32 %v45, %v265
    %v267 = vand.u32 %v266, 4294901760
    %268 = vmatpush.msra.mxu0 %v267
    %v269 = vand.u32 %v44, 4294901760
    %v270 = vsub.f32 %v44, %v269
    %v271 = vand.u32 %v270, 4294901760
    %272 = vmatpush.msra.mxu0 %v271
    %v273 = vand.u32 %v43, 4294901760
    %v274 = vsub.f32 %v43, %v273
    %v275 = vand.u32 %v274, 4294901760
    %276 = vmatpush.msra.mxu0 %v275
    %v277 = vand.u32 %v42, 4294901760
    %v278 = vsub.f32 %v42, %v277
    %v279 = vand.u32 %v278, 4294901760
    %280 = vmatpush.msra.mxu0 %v279
    %v281 = vand.u32 %v41, 4294901760
    %v282 = vsub.f32 %v41, %v281
    %v283 = vand.u32 %v282, 4294901760
    %284 = vmatpush.msra.mxu0 %v283
    %v285 = vand.u32 %v40, 4294901760
    %v286 = vsub.f32 %v40, %v285
    %v287 = vand.u32 %v286, 4294901760
    %288 = vmatpush.msra.mxu0 %v287
    %v289 = vand.u32 %v39, 4294901760
    %v290 = vsub.f32 %v39, %v289
    %v291 = vand.u32 %v290, 4294901760
    %292 = vmatpush.msra.mxu0 %v291
    %v293 = vand.u32 %v38, 4294901760
    %v294 = vsub.f32 %v38, %v293
    %v295 = vand.u32 %v294, 4294901760
    %296 = vmatpush.msra.mxu0 %v295
    %v297 = vand.u32 %v66, 4294901760
    %298 = vmatmul.f32.gmra.mxu0 %v297
    %v299 = vpop.f32.mrf.mxu0
    %v300 = vadd.f32 %v249, %v299
    %v301 = vand.u32 %v69, 4294901760
    %302 = vmatmul.f32.gmra.mxu0 %v301
    %v303 = vpop.f32.mrf.mxu0
    %v304 = vadd.f32 %v255, %v303
    %305 = vdwg.mxu0
    %306 = vmatpush.msra.mxu0 0.0
    %307 = vmatpush.msra.mxu0 0.0
    %308 = vmatpush.msra.mxu0 0.0
    %309 = vmatpush.msra.mxu0 0.0
    %310 = vmatpush.msra.mxu0 0.0
    %311 = vmatpush.msra.mxu0 0.0
    %312 = vmatpush.msra.mxu0 0.0
    %313 = vmatpush.msra.mxu0 0.0
    %v314 = vand.u32 %v45, 4294901760
    %315 = vmatpush.msra.mxu0 %v314
    %v316 = vand.u32 %v44, 4294901760
    %317 = vmatpush.msra.mxu0 %v316
    %v318 = vand.u32 %v43, 4294901760
    %319 = vmatpush.msra.mxu0 %v318
    %v320 = vand.u32 %v42, 4294901760
    %321 = vmatpush.msra.mxu0 %v320
    %v322 = vand.u32 %v41, 4294901760
    %323 = vmatpush.msra.mxu0 %v322
    %v324 = vand.u32 %v40, 4294901760
    %325 = vmatpush.msra.mxu0 %v324
    %v326 = vand.u32 %v39, 4294901760
    %327 = vmatpush.msra.mxu0 %v326
    %v328 = vand.u32 %v38, 4294901760
    %329 = vmatpush.msra.mxu0 %v328
    %v330 = vand.u32 %v66, 4294901760
    %331 = vmatmul.f32.gmra.mxu0 %v330
    %v332 = vpop.f32.mrf.mxu0
    %v333 = vadd.f32 %v300, %v332
    %v334 = vand.u32 %v69, 4294901760
    %335 = vmatmul.f32.gmra.mxu0 %v334
    %v336 = vpop.f32.mrf.mxu0
    %v337 = vadd.f32 %v304, %v336
    %338 = vdwg.mxu0
    %v339 = vadd.f32 %v62, %v333
    %v340 = vadd.f32 %v63, %v337
    %341 = vst [vmem:[#allocation2] sm:$0xff] %v339
    %342 = vst [vmem:[#allocation2 + $0x8] sm:$0xff] %v340
    // Predicated region
    $region18: #{tpu_custom_call.1} parent=1 // pred_check
      %p343 = pneg %p28
    $region19: #{tpu_custom_call.1} parent=1 // pred_check_branch
      %345 = sbr.rel (%p343) target = $region21
    $region20: #{tpu_custom_call.1} parent=1 // pred_region
      %v346 = vld [vmem:[#allocation2] sm:$0xff]
      %v347 = vld [vmem:[#allocation2 + $0x8] sm:$0xff]
      %v348 = vmul.f32 %v346, 11.313708
      %v349 = vmul.f32 %v347, 11.313708
      %350 = vst [vmem:[#allocation6] sm:$0xff] %v348
      %351 = vst [vmem:[#allocation6 + $0x8] sm:$0xff] %v349
    $region21: #{tpu_custom_call.1} parent=1 // pred_fallthru
      _
    // Predicated region
    $region22: #{tpu_custom_call.1} parent=1 // pred_check
      _
    $region23: #{tpu_custom_call.1} parent=1 // pred_check_branch
      %353 = sbr.rel (0) target = $region25
    $region24: #{tpu_custom_call.1} parent=1 // pred_region
      %355 = vsyncadd [#allocation5], 0
      %s356 = sshll.u32 [#allocation6], 4
      %s357 = int_to_ptr.vmem [resolvable:$true] %s356
      %s358 = sshll.u32 %s2, 4
      %s359 = int_to_ptr.hbm [resolvable:$true] %s358
      %364 = dma.vmem_to_hbm [thread:$0]  %s357, 256, %s359, [#allocation5], 128, 128, 8
    $region25: #{tpu_custom_call.1} parent=1 // pred_fallthru
      _
    // Predicated region
    $region26: #{tpu_custom_call.1} parent=1 // pred_check
      _
    $region27: #{tpu_custom_call.1} parent=1 // pred_check_branch
      %366 = sbr.rel (0) target = $region29
    $region28: #{tpu_custom_call.1} parent=1 // pred_region
      %368 = dma.done [#allocation5], 256
    $region29: #{tpu_custom_call.1} parent=1 // pred_fallthru
      _
    %369 = vsyncpa [#allocation4], 1
    %370 = vsyncpa [#allocation5], 1

// kernel: tpu_custom_call.1
$region0: #{tpu_custom_call.1}
  #allocation0 [shape = 'u32[]', space=smem, size = 0x4, offset = 0x4, fixed_abs, tag = 'smem constant byte address 0x4 - core index']
  #allocation1 [shape = 'u32[72,128]{1,0:T(1,128)}', space=vmem, size = 0x9000, scoped, tag = 'internal scratch']
  #allocation2 [shape = 'f32[16,128]{1,0:T(8,128)}', space=vmem, size = 0x2000, scoped, tag = 'scratch operand']
  %s0 = inlined_call_operand.vmem [shape: s32[16,1], index: 0, kind: input, shape index: {}]
  %s1 = inlined_call_operand.hbm [shape: f32[64,128], index: 1, kind: input, shape index: {}]
  %s2 = inlined_call_operand.hbm [shape: f32[16,128], index: 2, kind: output, shape index: {}]
  %s3 = sld [smem:[#allocation0]]
  $region30: #{tpu_custom_call.1} parent=0
    _
  %s5 = ssub.s32 1, %s3
  %s6 = scalar_select 0, %s5, %s3
  $region1: #{tpu_custom_call.1} parent=0
    #allocation3 [shape = 'u8[32768]{0}', space=vmem, size = 0x8000, scoped, tag = 'input window, operand 1, single buffered']
    #allocation4 [shape = 's32[1]{0}', space=sflag, size = 0x4, scoped, tag = 'scoped memory for tpu_custom_call.1']
    #allocation5 [shape = 's32[1]{0}', space=sflag, size = 0x4, scoped, tag = 'scoped memory for tpu_custom_call.1']
    #allocation6 [shape = 'u8[8192]{0}', space=vmem, size = 0x2000, scoped, tag = 'output window, operand 0, single buffered']
    %7 = vsyncpa [#allocation4], 0
    %8 = vsyncpa [#allocation5], 0
    // Predicated region
    $region2: #{tpu_custom_call.1} parent=1 // pred_check
      _
    $region3: #{tpu_custom_call.1} parent=1 // pred_check_branch
      %10 = sbr.rel (0) target = $region5
    $region4: #{tpu_custom_call.1} parent=1 // pred_region
      _
    $region5: #{tpu_custom_call.1} parent=1 // pred_fallthru
      _
    // Predicated region
    $region6: #{tpu_custom_call.1} parent=1 // pred_check
      _
    $region7: #{tpu_custom_call.1} parent=1 // pred_check_branch
      %12 = sbr.rel (0) target = $region9
    $region8: #{tpu_custom_call.1} parent=1 // pred_region
      %14 = vsyncadd [#allocation4], 0
      %s15 = sshll.u32 %s1, 4
      %s16 = int_to_ptr.hbm [resolvable:$true] %s15
      %s17 = sshll.u32 [#allocation3], 4
      %s18 = int_to_ptr.vmem [resolvable:$true] %s17
      %23 = dma.hbm_to_vmem [thread:$0]  %s16, 1024, %s18, [#allocation4], 128, 128, 8
    $region9: #{tpu_custom_call.1} parent=1 // pred_fallthru
      _
    // Predicated region
    $region10: #{tpu_custom_call.1} parent=1 // pred_check
      _
    $region11: #{tpu_custom_call.1} parent=1 // pred_check_branch
      %25 = sbr.rel (0) target = $region13
    $region12: #{tpu_custom_call.1} parent=1 // pred_region
      %27 = dma.done [#allocation4], 1024
    $region13: #{tpu_custom_call.1} parent=1 // pred_fallthru
      _
    %p28 = scmp.eq.s32.totalorder 0, 0
    // Predicated region
    $region14: #{tpu_custom_call.1} parent=1 // pred_check
      %p29 = pneg %p28
    $region15: #{tpu_custom_call.1} parent=1 // pred_check_branch
      %31 = sbr.rel (%p29) target = $region17
    $region16: #{tpu_custom_call.1} parent=1 // pred_region
      %32 = vst [vmem:[#allocation2] sm:$0xff] 0.0
      %33 = vst [vmem:[#allocation2 + $0x8] sm:$0xff] 0.0
    $region17: #{tpu_custom_call.1} parent=1 // pred_fallthru
      _
    %v34 = vld [vmem:[%s0] sm:$0xff]
    %v35 = vld [vmem:[%s0 + $0x8] sm:$0xff]
    %s36 = smul.u32 0, 64
    %s37 = scalar_lea.vmem [#allocation3], %s36
    %v38 = vld [vmem:[%s37] sm:$0xff]
    %v39 = vld [vmem:[%s37 + $0x8] sm:$0xff]
    %v40 = vld [vmem:[%s37 + $0x10] sm:$0xff]
    %v41 = vld [vmem:[%s37 + $0x18] sm:$0xff]
    %v42 = vld [vmem:[%s37 + $0x20] sm:$0xff]
    %v43 = vld [vmem:[%s37 + $0x28] sm:$0xff]
    %v44 = vld [vmem:[%s37 + $0x30] sm:$0xff]
    %v45 = vld [vmem:[%s37 + $0x38] sm:$0xff]
    %v46 = vlaneseq
    %v47 = vand.u32 %v46, 127
    %v48 = vstv %s36
    %v49 = vadd.s32 %v47, %v48
    %50 = vset.pattern.permute.xlu0 0
    %51 = vperm.xlu0 %50, %v34
    %v52 = vpop.permute.xlu0 %51
    %53 = vset.pattern.permute.xlu0 0
    %54 = vperm.xlu0 %53, %v35
    %v55 = vpop.permute.xlu0 %54
    %vm56 = vcmp.eq.s32.totalorder %v49, %v52
    %vm57 = vcmp.eq.s32.totalorder %v49, %v55
    %v58 = vsel %vm56, 1, 0
    %v59 = vsel %vm57, 1, 0
    %v60 = vcvt.s32.f32 %v58
    %v61 = vcvt.s32.f32 %v59
    %v62 = vld [vmem:[#allocation2] sm:$0xff]
    %v63 = vld [vmem:[#allocation2 + $0x8] sm:$0xff]
    %vm64 = vcmask 523264
    %v66 = vsel %vm64, %v60, 0
    %v69 = vsel %vm64, %v61, 0
    %71 = vmatpush.msra.mxu0 0.0
    %72 = vmatpush.msra.mxu0 0.0
    %73 = vmatpush.msra.mxu0 0.0
    %74 = vmatpush.msra.mxu0 0.0
    %75 = vmatpush.msra.mxu0 0.0
    %76 = vmatpush.msra.mxu0 0.0
    %77 = vmatpush.msra.mxu0 0.0
    %78 = vmatpush.msra.mxu0 0.0
    %v79 = vand.u32 %v45, 4294901760
    %80 = vmatpush.msra.mxu0 %v79
    %v81 = vand.u32 %v44, 4294901760
    %82 = vmatpush.msra.mxu0 %v81
    %v83 = vand.u32 %v43, 4294901760
    %84 = vmatpush.msra.mxu0 %v83
    %v85 = vand.u32 %v42, 4294901760
    %86 = vmatpush.msra.mxu0 %v85
    %v87 = vand.u32 %v41, 4294901760
    %88 = vmatpush.msra.mxu0 %v87
    %v89 = vand.u32 %v40, 4294901760
    %90 = vmatpush.msra.mxu0 %v89
    %v91 = vand.u32 %v39, 4294901760
    %92 = vmatpush.msra.mxu0 %v91
    %v93 = vand.u32 %v38, 4294901760
    %94 = vmatpush.msra.mxu0 %v93
    %v95 = vand.u32 %v66, 4294901760
    %v96 = vsub.f32 %v66, %v95
    %v97 = vand.u32 %v96, 4294901760
    %v98 = vsub.f32 %v96, %v97
    %v99 = vand.u32 %v98, 4294901760
    %100 = vmatmul.f32.gmra.mxu0 %v99
    %v101 = vpop.f32.mrf.mxu0
    %v102 = vadd.f32 0.0, %v101
    %v103 = vand.u32 %v69, 4294901760
    %v104 = vsub.f32 %v69, %v103
    %v105 = vand.u32 %v104, 4294901760
    %v106 = vsub.f32 %v104, %v105
    %v107 = vand.u32 %v106, 4294901760
    %108 = vmatmul.f32.gmra.mxu0 %v107
    %v109 = vpop.f32.mrf.mxu0
    %v110 = vadd.f32 0.0, %v109
    %111 = vdwg.mxu0
    %112 = vmatpush.msra.mxu0 0.0
    %113 = vmatpush.msra.mxu0 0.0
    %114 = vmatpush.msra.mxu0 0.0
    %115 = vmatpush.msra.mxu0 0.0
    %116 = vmatpush.msra.mxu0 0.0
    %117 = vmatpush.msra.mxu0 0.0
    %118 = vmatpush.msra.mxu0 0.0
    %119 = vmatpush.msra.mxu0 0.0
    %v120 = vand.u32 %v45, 4294901760
    %v121 = vsub.f32 %v45, %v120
    %v122 = vand.u32 %v121, 4294901760
    %v123 = vsub.f32 %v121, %v122
    %v124 = vand.u32 %v123, 4294901760
    %125 = vmatpush.msra.mxu0 %v124
    %v126 = vand.u32 %v44, 4294901760
    %v127 = vsub.f32 %v44, %v126
    %v128 = vand.u32 %v127, 4294901760
    %v129 = vsub.f32 %v127, %v128
    %v130 = vand.u32 %v129, 4294901760
    %131 = vmatpush.msra.mxu0 %v130
    %v132 = vand.u32 %v43, 4294901760
    %v133 = vsub.f32 %v43, %v132
    %v134 = vand.u32 %v133, 4294901760
    %v135 = vsub.f32 %v133, %v134
    %v136 = vand.u32 %v135, 4294901760
    %137 = vmatpush.msra.mxu0 %v136
    %v138 = vand.u32 %v42, 4294901760
    %v139 = vsub.f32 %v42, %v138
    %v140 = vand.u32 %v139, 4294901760
    %v141 = vsub.f32 %v139, %v140
    %v142 = vand.u32 %v141, 4294901760
    %143 = vmatpush.msra.mxu0 %v142
    %v144 = vand.u32 %v41, 4294901760
    %v145 = vsub.f32 %v41, %v144
    %v146 = vand.u32 %v145, 4294901760
    %v147 = vsub.f32 %v145, %v146
    %v148 = vand.u32 %v147, 4294901760
    %149 = vmatpush.msra.mxu0 %v148
    %v150 = vand.u32 %v40, 4294901760
    %v151 = vsub.f32 %v40, %v150
    %v152 = vand.u32 %v151, 4294901760
    %v153 = vsub.f32 %v151, %v152
    %v154 = vand.u32 %v153, 4294901760
    %155 = vmatpush.msra.mxu0 %v154
    %v156 = vand.u32 %v39, 4294901760
    %v157 = vsub.f32 %v39, %v156
    %v158 = vand.u32 %v157, 4294901760
    %v159 = vsub.f32 %v157, %v158
    %v160 = vand.u32 %v159, 4294901760
    %161 = vmatpush.msra.mxu0 %v160
    %v162 = vand.u32 %v38, 4294901760
    %v163 = vsub.f32 %v38, %v162
    %v164 = vand.u32 %v163, 4294901760
    %v165 = vsub.f32 %v163, %v164
    %v166 = vand.u32 %v165, 4294901760
    %167 = vmatpush.msra.mxu0 %v166
    %v168 = vand.u32 %v66, 4294901760
    %169 = vmatmul.f32.gmra.mxu0 %v168
    %v170 = vpop.f32.mrf.mxu0
    %v171 = vadd.f32 %v102, %v170
    %v172 = vand.u32 %v69, 4294901760
    %173 = vmatmul.f32.gmra.mxu0 %v172
    %v174 = vpop.f32.mrf.mxu0
    %v175 = vadd.f32 %v110, %v174
    %176 = vdwg.mxu0
    %177 = vmatpush.msra.mxu0 0.0
    %178 = vmatpush.msra.mxu0 0.0
    %179 = vmatpush.msra.mxu0 0.0
    %180 = vmatpush.msra.mxu0 0.0
    %181 = vmatpush.msra.mxu0 0.0
    %182 = vmatpush.msra.mxu0 0.0
    %183 = vmatpush.msra.mxu0 0.0
    %184 = vmatpush.msra.mxu0 0.0
    %v185 = vand.u32 %v45, 4294901760
    %v186 = vsub.f32 %v45, %v185
    %187 = vmatpush.msra.mxu0 %v186
    %v188 = vand.u32 %v44, 4294901760
    %v189 = vsub.f32 %v44, %v188
    %190 = vmatpush.msra.mxu0 %v189
    %v191 = vand.u32 %v43, 4294901760
    %v192 = vsub.f32 %v43, %v191
    %193 = vmatpush.msra.mxu0 %v192
    %v194 = vand.u32 %v42, 4294901760
    %v195 = vsub.f32 %v42, %v194
    %196 = vmatpush.msra.mxu0 %v195
    %v197 = vand.u32 %v41, 4294901760
    %v198 = vsub.f32 %v41, %v197
    %199 = vmatpush.msra.mxu0 %v198
    %v200 = vand.u32 %v40, 4294901760
    %v201 = vsub.f32 %v40, %v200
    %202 = vmatpush.msra.mxu0 %v201
    %v203 = vand.u32 %v39, 4294901760
    %v204 = vsub.f32 %v39, %v203
    %205 = vmatpush.msra.mxu0 %v204
    %v206 = vand.u32 %v38, 4294901760
    %v207 = vsub.f32 %v38, %v206
    %208 = vmatpush.msra.mxu0 %v207
    %v209 = vand.u32 %v66, 4294901760
    %v210 = vsub.f32 %v66, %v209
    %211 = vmatmul.f32.gmra.mxu0 %v210
    %v212 = vpop.f32.mrf.mxu0
    %v213 = vadd.f32 %v171, %v212
    %v214 = vand.u32 %v69, 4294901760
    %v215 = vsub.f32 %v69, %v214
    %216 = vmatmul.f32.gmra.mxu0 %v215
    %v217 = vpop.f32.mrf.mxu0
    %v218 = vadd.f32 %v175, %v217
    %219 = vdwg.mxu0
    %220 = vmatpush.msra.mxu0 0.0
    %221 = vmatpush.msra.mxu0 0.0
    %222 = vmatpush.msra.mxu0 0.0
    %223 = vmatpush.msra.mxu0 0.0
    %224 = vmatpush.msra.mxu0 0.0
    %225 = vmatpush.msra.mxu0 0.0
    %226 = vmatpush.msra.mxu0 0.0
    %227 = vmatpush.msra.mxu0 0.0
    %v228 = vand.u32 %v45, 4294901760
    %229 = vmatpush.msra.mxu0 %v228
    %v230 = vand.u32 %v44, 4294901760
    %231 = vmatpush.msra.mxu0 %v230
    %v232 = vand.u32 %v43, 4294901760
    %233 = vmatpush.msra.mxu0 %v232
    %v234 = vand.u32 %v42, 4294901760
    %235 = vmatpush.msra.mxu0 %v234
    %v236 = vand.u32 %v41, 4294901760
    %237 = vmatpush.msra.mxu0 %v236
    %v238 = vand.u32 %v40, 4294901760
    %239 = vmatpush.msra.mxu0 %v238
    %v240 = vand.u32 %v39, 4294901760
    %241 = vmatpush.msra.mxu0 %v240
    %v242 = vand.u32 %v38, 4294901760
    %243 = vmatpush.msra.mxu0 %v242
    %v244 = vand.u32 %v66, 4294901760
    %v245 = vsub.f32 %v66, %v244
    %v246 = vand.u32 %v245, 4294901760
    %247 = vmatmul.f32.gmra.mxu0 %v246
    %v248 = vpop.f32.mrf.mxu0
    %v249 = vadd.f32 %v213, %v248
    %v250 = vand.u32 %v69, 4294901760
    %v251 = vsub.f32 %v69, %v250
    %v252 = vand.u32 %v251, 4294901760
    %253 = vmatmul.f32.gmra.mxu0 %v252
    %v254 = vpop.f32.mrf.mxu0
    %v255 = vadd.f32 %v218, %v254
    %256 = vdwg.mxu0
    %257 = vmatpush.msra.mxu0 0.0
    %258 = vmatpush.msra.mxu0 0.0
    %259 = vmatpush.msra.mxu0 0.0
    %260 = vmatpush.msra.mxu0 0.0
    %261 = vmatpush.msra.mxu0 0.0
    %262 = vmatpush.msra.mxu0 0.0
    %263 = vmatpush.msra.mxu0 0.0
    %264 = vmatpush.msra.mxu0 0.0
    %v265 = vand.u32 %v45, 4294901760
    %v266 = vsub.f32 %v45, %v265
    %v267 = vand.u32 %v266, 4294901760
    %268 = vmatpush.msra.mxu0 %v267
    %v269 = vand.u32 %v44, 4294901760
    %v270 = vsub.f32 %v44, %v269
    %v271 = vand.u32 %v270, 4294901760
    %272 = vmatpush.msra.mxu0 %v271
    %v273 = vand.u32 %v43, 4294901760
    %v274 = vsub.f32 %v43, %v273
    %v275 = vand.u32 %v274, 4294901760
    %276 = vmatpush.msra.mxu0 %v275
    %v277 = vand.u32 %v42, 4294901760
    %v278 = vsub.f32 %v42, %v277
    %v279 = vand.u32 %v278, 4294901760
    %280 = vmatpush.msra.mxu0 %v279
    %v281 = vand.u32 %v41, 4294901760
    %v282 = vsub.f32 %v41, %v281
    %v283 = vand.u32 %v282, 4294901760
    %284 = vmatpush.msra.mxu0 %v283
    %v285 = vand.u32 %v40, 4294901760
    %v286 = vsub.f32 %v40, %v285
    %v287 = vand.u32 %v286, 4294901760
    %288 = vmatpush.msra.mxu0 %v287
    %v289 = vand.u32 %v39, 4294901760
    %v290 = vsub.f32 %v39, %v289
    %v291 = vand.u32 %v290, 4294901760
    %292 = vmatpush.msra.mxu0 %v291
    %v293 = vand.u32 %v38, 4294901760
    %v294 = vsub.f32 %v38, %v293
    %v295 = vand.u32 %v294, 4294901760
    %296 = vmatpush.msra.mxu0 %v295
    %v297 = vand.u32 %v66, 4294901760
    %298 = vmatmul.f32.gmra.mxu0 %v297
    %v299 = vpop.f32.mrf.mxu0
    %v300 = vadd.f32 %v249, %v299
    %v301 = vand.u32 %v69, 4294901760
    %302 = vmatmul.f32.gmra.mxu0 %v301
    %v303 = vpop.f32.mrf.mxu0
    %v304 = vadd.f32 %v255, %v303
    %305 = vdwg.mxu0
    %306 = vmatpush.msra.mxu0 0.0
    %307 = vmatpush.msra.mxu0 0.0
    %308 = vmatpush.msra.mxu0 0.0
    %309 = vmatpush.msra.mxu0 0.0
    %310 = vmatpush.msra.mxu0 0.0
    %311 = vmatpush.msra.mxu0 0.0
    %312 = vmatpush.msra.mxu0 0.0
    %313 = vmatpush.msra.mxu0 0.0
    %v314 = vand.u32 %v45, 4294901760
    %315 = vmatpush.msra.mxu0 %v314
    %v316 = vand.u32 %v44, 4294901760
    %317 = vmatpush.msra.mxu0 %v316
    %v318 = vand.u32 %v43, 4294901760
    %319 = vmatpush.msra.mxu0 %v318
    %v320 = vand.u32 %v42, 4294901760
    %321 = vmatpush.msra.mxu0 %v320
    %v322 = vand.u32 %v41, 4294901760
    %323 = vmatpush.msra.mxu0 %v322
    %v324 = vand.u32 %v40, 4294901760
    %325 = vmatpush.msra.mxu0 %v324
    %v326 = vand.u32 %v39, 4294901760
    %327 = vmatpush.msra.mxu0 %v326
    %v328 = vand.u32 %v38, 4294901760
    %329 = vmatpush.msra.mxu0 %v328
    %v330 = vand.u32 %v66, 4294901760
    %331 = vmatmul.f32.gmra.mxu0 %v330
    %v332 = vpop.f32.mrf.mxu0
    %v333 = vadd.f32 %v300, %v332
    %v334 = vand.u32 %v69, 4294901760
    %335 = vmatmul.f32.gmra.mxu0 %v334
    %v336 = vpop.f32.mrf.mxu0
    %v337 = vadd.f32 %v304, %v336
    %338 = vdwg.mxu0
    %v339 = vadd.f32 %v62, %v333
    %v340 = vadd.f32 %v63, %v337
    %341 = vst [vmem:[#allocation2] sm:$0xff] %v339
    %342 = vst [vmem:[#allocation2 + $0x8] sm:$0xff] %v340
    // Predicated region
    $region18: #{tpu_custom_call.1} parent=1 // pred_check
      %p343 = pneg %p28
    $region19: #{tpu_custom_call.1} parent=1 // pred_check_branch
      %345 = sbr.rel (%p343) target = $region21
    $region20: #{tpu_custom_call.1} parent=1 // pred_region
      %v346 = vld [vmem:[#allocation2] sm:$0xff]
      %v347 = vld [vmem:[#allocation2 + $0x8] sm:$0xff]
      %v348 = vmul.f32 %v346, 11.313708
      %v349 = vmul.f32 %v347, 11.313708
      %350 = vst [vmem:[#allocation6] sm:$0xff] %v348
      %351 = vst [vmem:[#allocation6 + $0x8] sm:$0xff] %v349
    $region21: #{tpu_custom_call.1} parent=1 // pred_fallthru
      _
    // Predicated region
    $region22: #{tpu_custom_call.1} parent=1 // pred_check
      _
    $region23: #{tpu_custom_call.1} parent=1 // pred_check_branch
      %353 = sbr.rel (0) target = $region25
    $region24: #{tpu_custom_call.1} parent=1 // pred_region
      %355 = vsyncadd [#allocation5], 0
      %s356 = sshll.u32 [#allocation6], 4
      %s357 = int_to_ptr.vmem [resolvable:$true] %s356
      %s358 = sshll.u32 %s2, 4
      %s359 = int_to_ptr.hbm [resolvable:$true] %s358
      %364 = dma.vmem_to_hbm [thread:$0]  %s357, 256, %s359, [#allocation5], 128, 128, 8
    $region25: #{tpu_custom_call.1} parent=1 // pred_fallthru
      _
    // Predicated region
    $region26: #{tpu_custom_call.1} parent=1 // pred_check
      _
    $region27: #{tpu_custom_call.1} parent=1 // pred_check_branch
      %366 = sbr.rel (0) target = $region29
    $region28: #{tpu_custom_call.1} parent=1 // pred_region
      %368 = dma.done [#allocation5], 256
    $region29: #{tpu_custom_call.1} parent=1 // pred_fallthru
      _
    %369 = vsyncpa [#allocation4], 1
    %370 = vsyncpa [#allocation5], 1

</llo_original>
